<compile_context>
chip_gen: v7x
topology: tpu7x:2x2x1
jax: 0.10.0
libtpu: 0.0.40
codegen_flags: <defaults>
</compile_context>

<pallas_src>
import jax
import jax.numpy as jnp
import numpy as np
from jax.experimental import pallas as pl
from jax.experimental.pallas import tpu as pltpu


def _make_kernel(lb_pos, lb_neg, ignore_index, num_classes, tile_p,
                 tiles_per_chunk, num_pixels):
    # Folded-loss constant (python float -> compile-time immediate).
    tgt_sum = float(lb_pos + (num_classes - 1) * lb_neg)     # sum_c target_c
    lb_pos = float(lb_pos)
    lb_neg = float(lb_neg)

    def kernel(logits_ref, label_ref, loss_ref):
        chunk = pl.program_id(1)
        t = pl.program_id(2)
        # UNCLAMPED global pixel offset of this (chunk, tile).  Tiles whose
        # index_map got clamped (duplicate / fully-out-of-range tail tiles of
        # the last chunk) mask out entirely here and contribute zero.
        pix0 = (chunk * tiles_per_chunk + t) * tile_p

        x = logits_ref[0].astype(jnp.float32)                 # (C, TP) f32 compute
        lbl = label_ref[0]                                    # (1, TP) int32

        # Lane validity: ragged pixel tail + ignore_index pixels.
        lane = jax.lax.broadcasted_iota(jnp.int32, lbl.shape, 1)        # (1, TP)
        valid = jnp.logical_and((pix0 + lane) < num_pixels,
                                lbl != ignore_index)                    # (1, TP)

        # log-sum-exp over the class axis (sublanes).
        m = jnp.max(x, axis=0, keepdims=True)                                  # (1, TP)
        lse = m + jnp.log(jnp.sum(jnp.exp(x - m), axis=0, keepdims=True))      # (1, TP)

        # Fused weighted class reduction: loss = tgt_sum*lse - sum_c(w_c*x_c).
        # class_ids stays (C, 1); the compare broadcasts it against the
        # (1, TP) label row -> no (C, TP) int32 iota materialized per step.
        # (Ignored labels never match a class id -> w = lb_neg everywhere,
        #  harmless because those lanes are removed by the select below.)
        class_ids = jax.lax.broadcasted_iota(jnp.int32, (num_classes, 1), 0)
        w = jnp.where(class_ids == lbl, lb_pos, lb_neg)                 # (C, TP)
        wx = jnp.sum(w * x, axis=0, keepdims=True)                      # (1, TP)

        loss_px = tgt_sum * lse - wx
        # Keep this a SELECT (not a mask multiply): invalid / tail lanes hold
        # garbage logits whose exp/log may be NaN/Inf.
        loss_px = jnp.where(valid, loss_px, 0.0)

        # Lane-wide accumulation into the resident per-(n, chunk) output row;
        # the cross-lane reduce happens once, in the wrapper.
        @pl.when(t == 0)
        def _():
            loss_ref[0] = loss_px

        @pl.when(t > 0)
        def _():
            loss_ref[0] = loss_ref[0] + loss_px

    return kernel


def label_smooth_softmax_ce(logits, label, lb_smooth=0.1, reduction="mean",
                            ignore_index=255, tile_p=None, num_chunks=None,
                            vmem_limit_bytes=None):
    """logits: (N, C, H, W) float (f32 or bf16), label: (N, H, W) int.

    Matches the PyTorch LabelSmoothSoftmaxCE forward for reduction in
    {'mean', 'sum'}.  NOTE: like PyTorch, if every pixel is ignored the 'mean'
    path divides by zero.
    """
    N, C, H, W = logits.shape
    HW = H * W
    itemsize = jnp.dtype(logits.dtype).itemsize

    # --- tile_p: size by bytes, not lanes ----------------------------------
    # Target ~4 MiB per pipelined logits buffer (2x double-buffered) so that
    # together with ~4x C*tile_p*4 B of in-kernel f32 temporaries the total
    # stays well under v7x's 64 MiB per-TC VMEM while landing 16K-64K-lane
    # tiles for small-C (segmentation) inputs -> amortizes the ~0.35us/step
    # grid overhead and gives long contiguous per-class-row DMA segments.
    hw_tiles128 = ((HW + 127) // 128) * 128
    if tile_p is None:
        per_buf_budget = 4 * 1024 * 1024
        tile_p = (per_buf_budget // (C * itemsize)) // 128 * 128
    tile_p = int(max(128, (int(tile_p) // 128) * 128))
    tile_p = min(tile_p, hw_tiles128)
    total_tiles = (HW + tile_p - 1) // tile_p

    # --- pixel-chunk split: keep both v7x TensorCores busy when N == 1 ------
    if num_chunks is None:
        num_chunks = 2 if (N == 1 and total_tiles >= 2) else 1
    num_chunks = int(max(1, min(num_chunks, total_tiles)))
    tiles_per_chunk = (total_tiles + num_chunks - 1) // num_chunks
    last_tile = total_tiles - 1

    if vmem_limit_bytes is None:
        # 2x double-buffered logits tile + ~4x f32 temps + accumulator rows
        # comes to <= ~40 MiB with the 4 MiB per-buffer budget above, so a
        # 56 MiB cap is safe on every generation (v7x: 64 MiB physical/TC;
        # v5e/v6e: 128 MiB) while staying above the 16/32 MiB scoped defaults.
        vmem_limit_bytes = 56 * 1024 * 1024

    # --- glue (no HBM passes over the logits tensor) ------------------------
    logits3 = logits.reshape(N, C, HW)                    # contiguous reshape, free
    label3 = label.reshape(N, 1, HW).astype(jnp.int32)    # tiny array

    lb_pos = float(1.0 - lb_smooth)
    lb_neg = float(lb_smooth / C)
    kernel = _make_kernel(lb_pos, lb_neg, ignore_index, C, tile_p,
                          tiles_per_chunk, HW)

    if num_chunks == 1:
        def pix_block(n, c, t):
            return (n, 0, t)
    else:
        def pix_block(n, c, t):
            # Clamp so no block is ever fully out of bounds; duplicated tail
            # blocks are zero-masked in-kernel via the unclamped offset.
            return (n, 0, jnp.minimum(c * tiles_per_chunk + t, last_tile))

    loss_part = pl.pallas_call(
        kernel,
        out_shape=jax.ShapeDtypeStruct((N * num_chunks, 1, tile_p), jnp.float32),
        grid_spec=pltpu.PrefetchScalarGridSpec(
            num_scalar_prefetch=0,
            grid=(N, num_chunks, tiles_per_chunk),
            in_specs=[
                pl.BlockSpec((1, C, tile_p), pix_block),
                pl.BlockSpec((1, 1, tile_p), pix_block),
            ],
            out_specs=pl.BlockSpec(
                (1, 1, tile_p),
                lambda n, c, t: (n * num_chunks + c, 0, 0)),
        ),
        compiler_params=pltpu.CompilerParams(
            dimension_semantics=("parallel", "parallel", "arbitrary"),
            vmem_limit_bytes=int(vmem_limit_bytes)),
    )(logits3, label3)
    # TODO(synk): for classification-scale C (>=128) the sublane reductions
    # could be offloaded to the (idle) MXU via a ones(1,C) matmul.

    loss_sum = jnp.sum(loss_part)
    # n_valid from the label tensor directly (~0.1% of the logits traffic);
    # no per-tile valid-count accumulator needed in the kernel.
    n_valid = jnp.sum(label != ignore_index).astype(jnp.float32)

    if reduction == "mean":
        return loss_sum / n_valid
    if reduction == "sum":
        return loss_sum
    raise NotImplementedError("only 'mean' and 'sum' reductions are supported")
    # TODO(synk): reduction='none' (per-pixel loss map output) not wired up.


def _reference(logits, label, lb_smooth=0.1, ignore_index=255, reduction="mean"):
    # Pure-JAX reference of the PyTorch forward.
    N, C, H, W = logits.shape
    ignore = label == ignore_index
    n_valid = jnp.sum(~ignore)
    lbl = jnp.where(ignore, 0, label)
    lb_pos, lb_neg = 1.0 - lb_smooth, lb_smooth / C
    onehot = jax.nn.one_hot(lbl, C, axis=1, dtype=jnp.float32)          # (N,C,H,W)
    targets = jnp.where(onehot > 0, lb_pos, lb_neg)
    logs = jax.nn.log_softmax(logits.astype(jnp.float32), axis=1)
    loss = -jnp.sum(logs * targets, axis=1)                             # (N,H,W)
    loss = jnp.where(ignore, 0.0, loss)
    if reduction == "mean":
        return jnp.sum(loss) / n_valid
    return jnp.sum(loss)


if __name__ == "__main__":
    key = jax.random.PRNGKey(0)
    k1, k2, k3, k4, k5, k6 = jax.random.split(key, 6)

    # --- test 1: default path (N=2, single tile, no chunk split) -----------
    N, C, H, W = 2, 4, 16, 16
    logits = jax.random.normal(k1, (N, C, H, W), dtype=jnp.float32)
    label = jax.random.randint(k2, (N, H, W), 0, C, dtype=jnp.int32)
    ignore_mask = jax.random.bernoulli(k3, 0.1, (N, H, W))
    label = jnp.where(ignore_mask, 255, label)

    out = label_smooth_softmax_ce(logits, label, lb_smooth=0.1,
                                  reduction="mean", ignore_index=255)
    out = jax.block_until_ready(out)
    ref = jax.block_until_ready(_reference(logits, label))
    np.testing.assert_allclose(np.asarray(out), np.asarray(ref), rtol=2e-5, atol=2e-5)

    # --- test 2: N=1 multi-tile path (exercises the 2-chunk split + the
    # clamped index_map / fully-masked duplicate tail tile) ------------------
    N2, C2, H2, W2 = 1, 4, 24, 24          # HW=576, tile_p=128 -> 5 tiles, 2 chunks
    logits2 = jax.random.normal(k4, (N2, C2, H2, W2), dtype=jnp.float32)
    label2 = jax.random.randint(k5, (N2, H2, W2), 0, C2, dtype=jnp.int32)
    ignore2 = jax.random.bernoulli(k6, 0.1, (N2, H2, W2))
    label2 = jnp.where(ignore2, 255, label2)

    out2 = label_smooth_softmax_ce(logits2, label2, lb_smooth=0.1,
                                   reduction="mean", ignore_index=255,
                                   tile_p=128)
    out2 = jax.block_until_ready(out2)
    ref2 = jax.block_until_ready(_reference(logits2, label2))
    np.testing.assert_allclose(np.asarray(out2), np.asarray(ref2), rtol=2e-5, atol=2e-5)

    print("KERNEL_OK")
</pallas_src>

<mosaic_0001>
module attributes {stable_mosaic.version = 11 : i64} {
  func.func @kernel(%arg0: i32, %arg1: i32, %arg2: i32, %arg3: memref<1x4x256xf32, #tpu.memory_space<vmem>>, %arg4: memref<1x1x256xi32, #tpu.memory_space<vmem>>, %arg5: memref<1x1x256xf32, #tpu.memory_space<vmem>>) attributes {dimension_semantics = [#tpu.dimension_semantics<parallel>, #tpu.dimension_semantics<parallel>, #tpu.dimension_semantics<arbitrary>], iteration_bounds = array<i64: 2, 1, 1>, scalar_prefetch = 0 : i64, scratch_operands = 0 : i64, tpu.core_type = #tpu.core_type<tc>, window_params = [{transform_indices = @transform_0, window_bounds = array<i64: 1, 4, 256>}, {transform_indices = @transform_1, window_bounds = array<i64: 1, 1, 256>}, {transform_indices = @transform_2, window_bounds = array<i64: 1, 1, 256>}]} {
    %c1_i32 = arith.constant 1 : i32
    %0 = arith.muli %arg1, %c1_i32 : i32
    %1 = arith.addi %0, %arg2 : i32
    %c256_i32 = arith.constant 256 : i32
    %2 = arith.muli %1, %c256_i32 : i32
    %c0 = arith.constant 0 : index
    %c0_0 = arith.constant 0 : index
    %c0_1 = arith.constant 0 : index
    %3 = vector.load %arg3[%c0, %c0_0, %c0_1] : memref<1x4x256xf32, #tpu.memory_space<vmem>>, vector<1x4x256xf32>
    %4 = vector.shape_cast %3 : vector<1x4x256xf32> to vector<4x256xf32>
    %c0_2 = arith.constant 0 : index
    %c0_3 = arith.constant 0 : index
    %c0_4 = arith.constant 0 : index
    %5 = vector.load %arg4[%c0_2, %c0_3, %c0_4] : memref<1x1x256xi32, #tpu.memory_space<vmem>>, vector<1x1x256xi32>
    %6 = vector.shape_cast %5 : vector<1x1x256xi32> to vector<1x256xi32>
    %7 = tpu.iota {dimensions = array<i32: 1>} : vector<1x256xi32>
    %8 = vector.broadcast %2 : i32 to vector<1x256xi32>
    %9 = arith.addi %8, %7 : vector<1x256xi32>
    %c256_i32_5 = arith.constant 256 : i32
    %10 = vector.broadcast %c256_i32_5 : i32 to vector<1x256xi32>
    %11 = arith.cmpi slt, %9, %10 : vector<1x256xi32>
    %c255_i32 = arith.constant 255 : i32
    %12 = vector.broadcast %c255_i32 : i32 to vector<1x256xi32>
    %13 = arith.cmpi ne, %6, %12 : vector<1x256xi32>
    %14 = arith.andi %11, %13 : vector<1x256xi1>
    %cst = arith.constant dense<0xFF800000> : vector<256xf32>
    %15 = vector.multi_reduction <maximumf>, %4, %cst [0] : vector<4x256xf32> to vector<256xf32>
    %16 = vector.shape_cast %15 : vector<256xf32> to vector<1x256xf32>
    %17 = vector.broadcast %16 : vector<1x256xf32> to vector<4x256xf32>
    %18 = arith.subf %4, %17 : vector<4x256xf32>
    %19 = math.exp %18 : vector<4x256xf32>
    %cst_6 = arith.constant dense<0.000000e+00> : vector<256xf32>
    %20 = vector.multi_reduction <add>, %19, %cst_6 [0] : vector<4x256xf32> to vector<256xf32>
    %21 = vector.shape_cast %20 : vector<256xf32> to vector<1x256xf32>
    %22 = math.log %21 : vector<1x256xf32>
    %23 = arith.addf %16, %22 : vector<1x256xf32>
    %24 = tpu.iota {dimensions = array<i32: 0>} : vector<4x1xi32>
    %25 = vector.broadcast %24 : vector<4x1xi32> to vector<4x256xi32>
    %26 = vector.broadcast %6 : vector<1x256xi32> to vector<4x256xi32>
    %27 = arith.cmpi eq, %25, %26 : vector<4x256xi32>
    %cst_7 = arith.constant 0.899999976 : f32
    %cst_8 = arith.constant 2.500000e-02 : f32
    %28 = vector.broadcast %cst_7 : f32 to vector<4x256xf32>
    %29 = vector.broadcast %cst_8 : f32 to vector<4x256xf32>
    %30 = arith.select %27, %28, %29 : vector<4x256xi1>, vector<4x256xf32>
    %31 = arith.mulf %30, %4 : vector<4x256xf32>
    %cst_9 = arith.constant dense<0.000000e+00> : vector<256xf32>
    %32 = vector.multi_reduction <add>, %31, %cst_9 [0] : vector<4x256xf32> to vector<256xf32>
    %33 = vector.shape_cast %32 : vector<256xf32> to vector<1x256xf32>
    %cst_10 = arith.constant 9.750000e-01 : f32
    %34 = vector.broadcast %cst_10 : f32 to vector<1x256xf32>
    %35 = arith.mulf %34, %23 : vector<1x256xf32>
    %36 = arith.subf %35, %33 : vector<1x256xf32>
    %cst_11 = arith.constant 0.000000e+00 : f32
    %37 = vector.broadcast %cst_11 : f32 to vector<1x256xf32>
    %38 = arith.select %14, %36, %37 : vector<1x256xi1>, vector<1x256xf32>
    %c0_i32 = arith.constant 0 : i32
    %39 = arith.cmpi eq, %arg2, %c0_i32 : i32
    %40 = arith.extui %39 : i1 to i32
    %c0_i32_12 = arith.constant 0 : i32
    %41 = arith.cmpi ne, %40, %c0_i32_12 : i32
    scf.if %41 {
      %c0_15 = arith.constant 0 : index
      %c0_16 = arith.constant 0 : index
      %c0_17 = arith.constant 0 : index
      %45 = vector.load %arg5[%c0_15, %c0_16, %c0_17] : memref<1x1x256xf32, #tpu.memory_space<vmem>>, vector<1x1x256xf32>
      %46 = vector.shape_cast %45 : vector<1x1x256xf32> to vector<1x256xf32>
      %47 = vector.shape_cast %38 : vector<1x256xf32> to vector<1x1x256xf32>
      tpu.vector_store %arg5[%c0_15, %c0_16, %c0_17], %47 {strides = array<i32>} : memref<1x1x256xf32, #tpu.memory_space<vmem>>, vector<1x1x256xf32>,
    } else {
    }
    %c0_i32_13 = arith.constant 0 : i32
    %42 = arith.cmpi sgt, %arg2, %c0_i32_13 : i32
    %43 = arith.extui %42 : i1 to i32
    %c0_i32_14 = arith.constant 0 : i32
    %44 = arith.cmpi ne, %43, %c0_i32_14 : i32
    scf.if %44 {
      %c0_15 = arith.constant 0 : index
      %c0_16 = arith.constant 0 : index
      %c0_17 = arith.constant 0 : index
      %45 = vector.load %arg5[%c0_15, %c0_16, %c0_17] : memref<1x1x256xf32, #tpu.memory_space<vmem>>, vector<1x1x256xf32>
      %46 = vector.shape_cast %45 : vector<1x1x256xf32> to vector<1x256xf32>
      %47 = arith.addf %46, %38 : vector<1x256xf32>
      %c0_18 = arith.constant 0 : index
      %c0_19 = arith.constant 0 : index
      %c0_20 = arith.constant 0 : index
      %48 = vector.load %arg5[%c0_18, %c0_19, %c0_20] : memref<1x1x256xf32, #tpu.memory_space<vmem>>, vector<1x1x256xf32>
      %49 = vector.shape_cast %48 : vector<1x1x256xf32> to vector<1x256xf32>
      %50 = vector.shape_cast %47 : vector<1x256xf32> to vector<1x1x256xf32>
      tpu.vector_store %arg5[%c0_18, %c0_19, %c0_20], %50 {strides = array<i32>} : memref<1x1x256xf32, #tpu.memory_space<vmem>>, vector<1x1x256xf32>,
    } else {
    }
    return
  }
  func.func @transform_0(%arg0: i32, %arg1: i32, %arg2: i32) -> (i32, i32, i32) {
    %c0_i32 = arith.constant 0 : i32
    %c0_i32_0 = arith.constant 0 : i32
    return %arg0, %c0_i32, %arg2 : i32, i32, i32
  }
  func.func @transform_1(%arg0: i32, %arg1: i32, %arg2: i32) -> (i32, i32, i32) {
    %c0_i32 = arith.constant 0 : i32
    %c0_i32_0 = arith.constant 0 : i32
    return %arg0, %c0_i32, %arg2 : i32, i32, i32
  }
  func.func @transform_2(%arg0: i32, %arg1: i32, %arg2: i32) -> (i32, i32, i32) {
    %c1_i32 = arith.constant 1 : i32
    %0 = arith.muli %arg0, %c1_i32 : i32
    %1 = arith.addi %0, %arg1 : i32
    %c0_i32 = arith.constant 0 : i32
    %c0_i32_0 = arith.constant 0 : i32
    %c0_i32_1 = arith.constant 0 : i32
    return %1, %c0_i32, %c0_i32_0 : i32, i32, i32
  }
}

</mosaic_0001>

<llo_original>
// kernel: tpu_custom_call.1
$region0: #{tpu_custom_call.1}
  #allocation0 [shape = 'u32[]', space=smem, size = 0x4, offset = 0x4, fixed_abs, tag = 'smem constant byte address 0x4 - core index']
  #allocation1 [shape = 'u32[144,128]{1,0:T(1,128)}', space=vmem, size = 0x12000, scoped, tag = 'internal scratch']
  %s0 = inlined_call_operand.hbm [shape: f32[2,4,256], index: 0, kind: input, shape index: {}]
  %s1 = inlined_call_operand.hbm [shape: s32[2,1,256], index: 1, kind: input, shape index: {}]
  %s2 = inlined_call_operand.hbm [shape: f32[2,1,256], index: 2, kind: output, shape index: {}]
  %s3 = sld [smem:[#allocation0]]
  $region57: #{tpu_custom_call.1} parent=0
    _
  %s5 = ssub.s32 1, %s3
  %s6 = scalar_select 0, %s5, %s3
  $region1: #{tpu_custom_call.1} parent=0
    #allocation2 [shape = 'u8[8192]{0}', space=vmem, size = 0x2000, scoped, tag = 'input window, operand 0']
    #allocation3 [shape = 's32[2]{0}', space=sflag, size = 0x8, scoped, tag = 'scoped memory for tpu_custom_call.1']
    #allocation4 [shape = 's32[2]{0}', space=sflag, size = 0x8, scoped, tag = 'scoped memory for tpu_custom_call.1']
    #allocation5 [shape = 'u8[2048]{0}', space=vmem, size = 0x800, scoped, tag = 'input window, operand 1']
    #allocation6 [shape = 's32[2]{0}', space=sflag, size = 0x8, scoped, tag = 'scoped memory for tpu_custom_call.1']
    #allocation7 [shape = 'u8[2048]{0}', space=vmem, size = 0x800, scoped, tag = 'output window, operand 0']
    %7 = vsyncpa [#allocation3], 0
    %s8 = scalar_lea.sflag [#allocation3], 1
    %9 = vsyncpa %s8, 0
    %10 = vsyncpa [#allocation6], 0
    %s11 = scalar_lea.sflag [#allocation6], 1
    %12 = vsyncpa %s11, 0
    %13 = vsyncpa [#allocation4], 0
    %s14 = scalar_lea.sflag [#allocation4], 1
    %15 = vsyncpa %s14, 0
    loop: start=0, step=1, limit=4
    $region2: #{tpu_custom_call.1} parent=1 // loop_pre_header
      _
    $region3: #{tpu_custom_call.1} parent=1 // loop_header
      %s17 = sphi 0, %s21
      %p18 = scmp.ge.s32.totalorder %s17, 4
      %s24 = sphi 0, %s43
      %s25 = sphi 0, %s39
      %s26 = sphi 0, %s35
      %s27 = sphi 0, %s24
      %s28 = sphi 0, %s25
      %s29 = sphi 0, %s26
      %s30 = sphi 0, %s27
      %s31 = sphi 0, %s28
      %s32 = sphi 0, %s29
      %s48 = sphi 0, %s50
      %s51 = sphi 0, %s48
      %s52 = sphi 0, %s51
      %s68 = sphi 0, %s52
      %s76 = sphi 0, %s78
      %s79 = sphi 0, %s76
      %s80 = sphi 0, %s79
      %s96 = sphi 0, %s80
      %s104 = sphi 0, %s106
      %s107 = sphi 0, %s104
      %s108 = sphi 0, %s107
      %s124 = sphi 0, %s108
    $region4: #{tpu_custom_call.1} parent=1 // loop_header_branch
      %20 = sbr.rel (%p18) target = $region8
    $region5: #{tpu_custom_call.1} parent=1 // loop_body
      %s22 = ssub.s32 %s17, 1
      %s23 = ssub.s32 %s17, 2
      %s33 = sadd.s32 1, %s26
      %p34 = scmp.ge.s32.totalorder %s33, 1
      %s35 = scalar_select %p34, 0, %s33
      %s36 = sadd.s32 1, %s25
      %s37 = scalar_select %p34, %s36, %s25
      %p38 = scmp.ge.s32.totalorder %s37, 1
      %s39 = scalar_select %p38, 0, %s37
      %s40 = sadd.s32 1, %s24
      %s41 = scalar_select %p38, %s40, %s24
      %p42 = scmp.ge.s32.totalorder %s41, 2
      %s43 = scalar_select %p42, 0, %s41
      %s44 = ssub.s32 %s24, %s43
      %s45 = ssub.s32 %s26, %s35
      %s46 = sor.u32 %s44, %s45
      %p47 = scmp.eq.s32.totalorder %s46, 0
      %s49 = sadd.s32 %s48, 1
      %s50 = scalar_select %p47, %s48, %s49
      %p53 = pneg %p47
      %p54 = scmp.eq.s32.totalorder %s17, 1
      %p55 = por %p53, %p54
      %p56 = scmp.ne.s32.totalorder %s48, %s51
      %p57 = scmp.eq.s32.totalorder %s17, 0
      %p58 = por %p56, %p57
      %p59 = scmp.ne.s32.totalorder %s48, %s51
      %p60 = scmp.eq.s32.totalorder %s22, 1
      %p61 = por %p59, %p60
      %p62 = scmp.ne.s32.totalorder %s51, %s52
      %p63 = scmp.eq.s32.totalorder %s22, 0
      %p64 = por %p62, %p63
      %p65 = scmp.ne.s32.totalorder %s51, %s52
      %p66 = scmp.eq.s32.totalorder %s23, 1
      %p67 = por %p65, %p66
      %p69 = scmp.ne.s32.totalorder %s52, %s68
      %p70 = scmp.eq.s32.totalorder %s23, 0
      %p71 = por %p69, %p70
      %s72 = ssub.s32 %s24, %s43
      %s73 = ssub.s32 %s26, %s35
      %s74 = sor.u32 %s72, %s73
      %p75 = scmp.eq.s32.totalorder %s74, 0
      %s77 = sadd.s32 %s76, 1
      %s78 = scalar_select %p75, %s76, %s77
      %p81 = pneg %p75
      %p82 = scmp.eq.s32.totalorder %s17, 1
      %p83 = por %p81, %p82
      %p84 = scmp.ne.s32.totalorder %s76, %s79
      %p85 = scmp.eq.s32.totalorder %s17, 0
      %p86 = por %p84, %p85
      %p87 = scmp.ne.s32.totalorder %s76, %s79
      %p88 = scmp.eq.s32.totalorder %s22, 1
      %p89 = por %p87, %p88
      %p90 = scmp.ne.s32.totalorder %s79, %s80
      %p91 = scmp.eq.s32.totalorder %s22, 0
      %p92 = por %p90, %p91
      %p93 = scmp.ne.s32.totalorder %s79, %s80
      %p94 = scmp.eq.s32.totalorder %s23, 1
      %p95 = por %p93, %p94
      %p97 = scmp.ne.s32.totalorder %s80, %s96
      %p98 = scmp.eq.s32.totalorder %s23, 0
      %p99 = por %p97, %p98
      %s100 = sadd.s32 %s24, %s25
      %s101 = sadd.s32 %s43, %s39
      %s102 = ssub.s32 %s100, %s101
      %p103 = scmp.eq.s32.totalorder %s102, 0
      %s105 = sadd.s32 %s104, 1
      %s106 = scalar_select %p103, %s104, %s105
      %p109 = pneg %p103
      %p110 = scmp.eq.s32.totalorder %s17, 1
      %p111 = por %p109, %p110
      %p112 = scmp.ne.s32.totalorder %s104, %s107
      %p113 = scmp.eq.s32.totalorder %s17, 0
      %p114 = por %p112, %p113
      %p115 = scmp.ne.s32.totalorder %s104, %s107
      %p116 = scmp.eq.s32.totalorder %s22, 1
      %p117 = por %p115, %p116
      %p118 = scmp.ne.s32.totalorder %s107, %s108
      %p119 = scmp.eq.s32.totalorder %s22, 0
      %p120 = por %p118, %p119
      %p121 = scmp.ne.s32.totalorder %s107, %s108
      %p122 = scmp.eq.s32.totalorder %s23, 1
      %p123 = por %p121, %p122
      %p125 = scmp.ne.s32.totalorder %s108, %s124
      %p126 = scmp.eq.s32.totalorder %s23, 0
      %p127 = por %p125, %p126
      %p128 = scmp.le.s32.totalorder 1, %s17
      %p129 = scmp.lt.s32.totalorder %s17, 3
      %p130 = pnand %p128, %p129
      %p131 = pneg %p130
      // Predicated region
      $region9: #{tpu_custom_call.1} parent=5 // pred_check
        _
      $region10: #{tpu_custom_call.1} parent=5 // pred_check_branch
        %133 = sbr.rel (%p130) target = $region12
      $region11: #{tpu_custom_call.1} parent=5 // pred_region
        %s134 = ssub.s32 %s17, 1
      $region12: #{tpu_custom_call.1} parent=5 // pred_fallthru
        _
      %p135 = scmp.lt.s32.totalorder %s17, 2
      // Predicated region
      $region13: #{tpu_custom_call.1} parent=5 // pred_check
        %p136 = pneg %p135
      $region14: #{tpu_custom_call.1} parent=5 // pred_check_branch
        %138 = sbr.rel (%p136) target = $region16
      $region15: #{tpu_custom_call.1} parent=5 // pred_region
        // Predicated region
        $region17: #{tpu_custom_call.1} parent=15 // pred_check
          %p139 = pneg %p58
        $region18: #{tpu_custom_call.1} parent=15 // pred_check_branch
          %141 = sbr.rel (%p139) target = $region20
        $region19: #{tpu_custom_call.1} parent=15 // pred_region
          %s142 = sand.u32 %s48, 1
          %s143 = scalar_lea.sflag [#allocation3], %s142
          %s144 = sand.u32 %s48, 1
          %s145 = smul.addr %s144, 8
          %s146 = scalar_lea.vmem [#allocation2], %s145
          %s147 = smul.u32 2, %s26
          %s149 = ssub.s32 128, 128
          %150 = vsyncadd %s143, %s149
          %s151 = smul.addr %s24, 2
          %s152 = sadd.s32 %s147, %s151
          %s153 = smul.addr %s152, 64
          %s154 = scalar_lea.hbm %s0, %s153
          %s156 = sshll.u32 %s146, 4
          %s157 = int_to_ptr.vmem [resolvable:$true] %s156
          %159 = dma.hbm_to_vmem [thread:$0]  %s154, 128, %s157, %s143
        $region20: #{tpu_custom_call.1} parent=15 // pred_fallthru
          _
        // Predicated region
        $region21: #{tpu_custom_call.1} parent=15 // pred_check
          %p160 = pneg %p86
        $region22: #{tpu_custom_call.1} parent=15 // pred_check_branch
          %162 = sbr.rel (%p160) target = $region24
        $region23: #{tpu_custom_call.1} parent=15 // pred_region
          %s163 = sand.u32 %s76, 1
          %s164 = scalar_lea.sflag [#allocation6], %s163
          %s165 = sand.u32 %s76, 1
          %s166 = smul.addr %s165, 2
          %s167 = scalar_lea.vmem [#allocation5], %s166
          %s168 = smul.u32 2, %s26
          %s170 = ssub.s32 32, 32
          %171 = vsyncadd %s164, %s170
          %s172 = smul.addr %s24, 2
          %s173 = sadd.s32 %s168, %s172
          %s174 = smul.addr %s173, 16
          %s175 = scalar_lea.hbm %s1, %s174
          %s177 = sshll.u32 %s167, 4
          %s178 = int_to_ptr.vmem [resolvable:$true] %s177
          %180 = dma.hbm_to_vmem [thread:$0]  %s175, 32, %s178, %s164
        $region24: #{tpu_custom_call.1} parent=15 // pred_fallthru
          _
      $region16: #{tpu_custom_call.1} parent=5 // pred_fallthru
        _
      %p181 = scmp.le.s32.totalorder 1, %s17
      %p182 = scmp.lt.s32.totalorder %s17, 3
      %p183 = pnand %p181, %p182
      %p184 = pneg %p183
      // Predicated region
      $region25: #{tpu_custom_call.1} parent=5 // pred_check
        _
      $region26: #{tpu_custom_call.1} parent=5 // pred_check_branch
        %186 = sbr.rel (%p183) target = $region28
      $region27: #{tpu_custom_call.1} parent=5 // pred_region
        %s187 = ssub.s32 %s17, 1
        %s188 = sand.u32 %s51, 1
        %s189 = scalar_lea.sflag [#allocation3], %s188
        %s190 = sand.u32 %s51, 1
        %s191 = smul.addr %s190, 8
        %s192 = scalar_lea.vmem [#allocation2], %s191
        // Predicated region
        $region29: #{tpu_custom_call.1} parent=27 // pred_check
          %p193 = pneg %p64
        $region30: #{tpu_custom_call.1} parent=27 // pred_check_branch
          %195 = sbr.rel (%p193) target = $region32
        $region31: #{tpu_custom_call.1} parent=27 // pred_region
          %196 = dma.done %s189, 128
        $region32: #{tpu_custom_call.1} parent=27 // pred_fallthru
          _
        %s197 = sand.u32 %s79, 1
        %s198 = scalar_lea.sflag [#allocation6], %s197
        %s199 = sand.u32 %s79, 1
        %s200 = smul.addr %s199, 2
        %s201 = scalar_lea.vmem [#allocation5], %s200
        // Predicated region
        $region33: #{tpu_custom_call.1} parent=27 // pred_check
          %p202 = pneg %p92
        $region34: #{tpu_custom_call.1} parent=27 // pred_check_branch
          %204 = sbr.rel (%p202) target = $region36
        $region35: #{tpu_custom_call.1} parent=27 // pred_region
          %205 = dma.done %s198, 32
        $region36: #{tpu_custom_call.1} parent=27 // pred_fallthru
          _
        %s206 = sand.u32 %s51, 1
        %s207 = scalar_lea.sflag [#allocation3], %s206
        %s208 = sand.u32 %s51, 1
        %s209 = smul.addr %s208, 8
        %s210 = scalar_lea.vmem [#allocation2], %s209
        %p211 = pneg %p64
        %p212 = pneg %p61
        %s213 = sand.u32 %s79, 1
        %s214 = scalar_lea.sflag [#allocation6], %s213
        %s215 = sand.u32 %s79, 1
        %s216 = smul.addr %s215, 2
        %s217 = scalar_lea.vmem [#allocation5], %s216
        %p218 = pneg %p92
        %p219 = pneg %p89
        %p220 = pneg %p120
        %p221 = pneg %p117
        %s222 = sand.u32 %s107, 1
        %s223 = scalar_lea.sflag [#allocation4], %s222
        %s224 = sand.u32 %s107, 1
        %s225 = smul.addr %s224, 2
        %s226 = scalar_lea.vmem [#allocation7], %s225
        %s227 = smul.u32 2, %s29
        %s228 = smul.u32 2, %s29
        %s229 = sadd.s32 %s27, %s28
        %s230 = sadd.s32 %s28, %s29
        %s231 = smul.u32 %s230, 256
        %v232 = vld [vmem:[%s192] sm:$0xff]
        %v233 = vld [vmem:[%s201] sm:$0x3]
        %v234 = vlaneseq
        %v235 = vand.u32 %v234, 127
        %v236 = vadd.s32 %v235, 128
        %v237 = vstv %s231
        %v238 = vadd.s32 %v237, %v235
        %v239 = vadd.s32 %v237, %v236
        %vm240 = vcmp.lt.s32.totalorder %v238, 256
        %vm241 = vcmp.lt.s32.totalorder %v239, 256
        %vm242 = vcmp.ne.s32.totalorder %v233, 255
        %v243 = vsel %vm242, 1, 0
        %v244 = vlaneseq
        %v245 = vshrl.u32 %v244, 7
        %v246 = vsub.s32 0, %v245
        %v247 = vrot.slane %v243, %v246
        %v248 = vlaneseq
        %v249 = vshrl.u32 %v248, 7
        %v250 = vsub.s32 1, %v249
        %v251 = vrot.slane %v243, %v250
        %vm252 = vcmp.ne.s32.totalorder %v247, 0
        %vm253 = vcmp.ne.s32.totalorder %v251, 0
        %vm254 = vmand %vm240, %vm252
        %vm255 = vmand %vm241, %vm253
        %v257 = vcombine.high %v232, %v232
        %vm259 = vcmask 1043456
        %v260 = vsel %vm259, %v232, -inf
        %v261 = vrot.slane %v260, 4
        %v262 = vmax.f32 %v260, %v261
        %v263 = vrot.slane %v262, 2
        %v264 = vmax.f32 %v262, %v263
        %v265 = vrot.slane %v264, 1
        %v266 = vmax.f32 %v264, %v265
        %v267 = vsel %vm259, %v257, -inf
        %v268 = vrot.slane %v267, 4
        %v269 = vmax.f32 %v267, %v268
        %v270 = vrot.slane %v269, 2
        %v271 = vmax.f32 %v269, %v270
        %v272 = vrot.slane %v271, 1
        %v273 = vmax.f32 %v271, %v272
        %v276 = vcombine.low %v266, %v273
        %v278 = vsub.f32 %v232, %v276
        %v279 = vmul.f32 %v278, 1.442695
        %v280 = vpow.pop %v279
        %v282 = vcombine.high %v280, %v280
        %v284 = vsel %vm259, %v280, 0.0
        %v285 = vrot.slane %v284, 4
        %v286 = vadd.f32 %v284, %v285
        %v287 = vrot.slane %v286, 2
        %v288 = vadd.f32 %v286, %v287
        %v289 = vrot.slane %v288, 1
        %v290 = vadd.f32 %v288, %v289
        %v291 = vsel %vm259, %v282, 0.0
        %v292 = vrot.slane %v291, 4
        %v293 = vadd.f32 %v291, %v292
        %v294 = vrot.slane %v293, 2
        %v295 = vadd.f32 %v293, %v294
        %v296 = vrot.slane %v295, 1
        %v297 = vadd.f32 %v295, %v296
        %v298 = vlog2.pop %v290
        %v299 = vmul.f32 %v298, 0.6931472
        %v300 = vlog2.pop %v297
        %v301 = vmul.f32 %v300, 0.6931472
        %v302 = vadd.f32 %v266, %v299
        %v303 = vadd.f32 %v273, %v301
        %v304 = vlaneseq
        %v305 = vshrl.u32 %v304, 7
        %v306 = vlaneseq
        %v307 = vshrl.u32 %v306, 7
        %v308 = vsub.s32 0, %v307
        %v309 = vrot.slane %v233, %v308
        %v310 = vlaneseq
        %v311 = vshrl.u32 %v310, 7
        %v312 = vsub.s32 1, %v311
        %v313 = vrot.slane %v233, %v312
        %vm314 = vcmp.eq.s32.totalorder %v305, %v309
        %vm315 = vcmp.eq.s32.totalorder %v305, %v313
        %v316 = vsel %vm314, 0.9, 0.025
        %v317 = vsel %vm315, 0.9, 0.025
        %v318 = vmul.f32 %v316, %v232
        %v319 = vmul.f32 %v317, %v257
        %v320 = vsel %vm259, %v318, 0.0
        %v321 = vrot.slane %v320, 4
        %v322 = vadd.f32 %v320, %v321
        %v323 = vrot.slane %v322, 2
        %v324 = vadd.f32 %v322, %v323
        %v325 = vrot.slane %v324, 1
        %v326 = vadd.f32 %v324, %v325
        %v327 = vsel %vm259, %v319, 0.0
        %v328 = vrot.slane %v327, 4
        %v329 = vadd.f32 %v327, %v328
        %v330 = vrot.slane %v329, 2
        %v331 = vadd.f32 %v329, %v330
        %v332 = vrot.slane %v331, 1
        %v333 = vadd.f32 %v331, %v332
        %v334 = vmul.f32 %v302, 0.975
        %v335 = vmul.f32 %v303, 0.975
        %v336 = vsub.f32 %v334, %v326
        %v337 = vsub.f32 %v335, %v333
        %v338 = vsel %vm254, %v336, 0.0
        %v339 = vsel %vm255, %v337, 0.0
        %p340 = scmp.eq.s32.totalorder %s29, 0
        // Predicated region
        $region37: #{tpu_custom_call.1} parent=27 // pred_check
          %p341 = pneg %p340
        $region38: #{tpu_custom_call.1} parent=27 // pred_check_branch
          %343 = sbr.rel (%p341) target = $region40
        $region39: #{tpu_custom_call.1} parent=27 // pred_region
          %v346 = vcombine.low %v338, %v339
          %v348 = vunpack.c.l.s4 1966171168
          %v349 = vunpack.c.0.s8 %v348
          %v350 = vlaneseq
          %v351 = vshrl.u32 %v350, 7
          %v352 = vsub.s32 %v349, %v351
          %v353 = vrot.slane %v346, %v352
          %v355 = vunpack.c.l.s4 1966171168
          %v356 = vunpack.c.0.s8 %v355
          %v357 = vlaneseq
          %v358 = vshrl.u32 %v357, 7
          %v359 = vsub.s32 %v356, %v358
          %v360 = vrot.slane %v353, %v359
          %v362 = vlaneseq
          %vm363 = vcmp.ge.s32.totalorder %v362, 0
          %vm364 = vcmp.lt.s32.totalorder %v362, 256
          %vm365 = vmand %vm363, %vm364
          %366 = vst.msk [vmem:[%s226] sm:$0x3] %vm365, %v360
        $region40: #{tpu_custom_call.1} parent=27 // pred_fallthru
          _
        %p367 = scmp.gt.s32.totalorder %s29, 0
        // Predicated region
        $region41: #{tpu_custom_call.1} parent=27 // pred_check
          %p368 = pneg %p367
        $region42: #{tpu_custom_call.1} parent=27 // pred_check_branch
          %370 = sbr.rel (%p368) target = $region44
        $region43: #{tpu_custom_call.1} parent=27 // pred_region
          %v371 = vld [vmem:[%s226] sm:$0x3]
          %v374 = vcombine.low %v338, %v339
          %v376 = vunpack.c.l.s4 1966171168
          %v377 = vunpack.c.0.s8 %v376
          %v378 = vlaneseq
          %v379 = vshrl.u32 %v378, 7
          %v380 = vsub.s32 %v377, %v379
          %v381 = vrot.slane %v374, %v380
          %v383 = vunpack.c.l.s4 1966171168
          %v384 = vunpack.c.0.s8 %v383
          %v385 = vlaneseq
          %v386 = vshrl.u32 %v385, 7
          %v387 = vsub.s32 %v384, %v386
          %v388 = vrot.slane %v381, %v387
          %v390 = vadd.f32 %v371, %v388
          %v391 = vlaneseq
          %vm392 = vcmp.ge.s32.totalorder %v391, 0
          %vm393 = vcmp.lt.s32.totalorder %v391, 256
          %vm394 = vmand %vm392, %vm393
          %395 = vst.msk [vmem:[%s226] sm:$0x3] %vm394, %v390
        $region44: #{tpu_custom_call.1} parent=27 // pred_fallthru
          _
        %s396 = sand.u32 %s107, 1
        %s397 = scalar_lea.sflag [#allocation4], %s396
        %s398 = sand.u32 %s107, 1
        %s399 = smul.addr %s398, 2
        %s400 = scalar_lea.vmem [#allocation7], %s399
        // Predicated region
        $region45: #{tpu_custom_call.1} parent=27 // pred_check
          %p401 = pneg %p117
        $region46: #{tpu_custom_call.1} parent=27 // pred_check_branch
          %403 = sbr.rel (%p401) target = $region48
        $region47: #{tpu_custom_call.1} parent=27 // pred_region
          %s404 = sadd.s32 %s27, %s28
          %s406 = ssub.s32 32, 32
          %407 = vsyncadd %s397, %s406
          %s408 = smul.addr %s404, 2
          %s409 = smul.addr %s408, 16
          %s410 = scalar_lea.hbm %s2, %s409
          %s412 = sshll.u32 %s400, 4
          %s413 = int_to_ptr.vmem [resolvable:$true] %s412
          %415 = dma.vmem_to_hbm [thread:$0]  %s413, 32, %s410, %s397
        $region48: #{tpu_custom_call.1} parent=27 // pred_fallthru
          _
      $region28: #{tpu_custom_call.1} parent=5 // pred_fallthru
        _
      %p416 = scmp.le.s32.totalorder 2, %s17
      // Predicated region
      $region49: #{tpu_custom_call.1} parent=5 // pred_check
        %p417 = pneg %p416
      $region50: #{tpu_custom_call.1} parent=5 // pred_check_branch
        %419 = sbr.rel (%p417) target = $region52
      $region51: #{tpu_custom_call.1} parent=5 // pred_region
        %s420 = ssub.s32 %s17, 2
        // Predicated region
        $region53: #{tpu_custom_call.1} parent=51 // pred_check
          %p421 = pneg %p123
        $region54: #{tpu_custom_call.1} parent=51 // pred_check_branch
          %423 = sbr.rel (%p421) target = $region56
        $region55: #{tpu_custom_call.1} parent=51 // pred_region
          %s424 = sand.u32 %s108, 1
          %s425 = scalar_lea.sflag [#allocation4], %s424
          %s426 = sand.u32 %s108, 1
          %s427 = smul.addr %s426, 2
          %s428 = scalar_lea.vmem [#allocation7], %s427
          %429 = dma.done %s425, 32
        $region56: #{tpu_custom_call.1} parent=51 // pred_fallthru
          _
      $region52: #{tpu_custom_call.1} parent=5 // pred_fallthru
        _
    $region6: #{tpu_custom_call.1} parent=1 // loop_footer
      %s21 = sadd.s32 1, %s17
    $region7: #{tpu_custom_call.1} parent=1 // loop_footer_branch
      %16 = sbr.rel target = $region3
    $region8: #{tpu_custom_call.1} parent=1 // loop_exit
      _
    %430 = vsyncpa [#allocation3], 1
    %s431 = scalar_lea.sflag [#allocation3], 1
    %432 = vsyncpa %s431, 1
    %433 = vsyncpa [#allocation6], 1
    %s434 = scalar_lea.sflag [#allocation6], 1
    %435 = vsyncpa %s434, 1
    %436 = vsyncpa [#allocation4], 1
    %s437 = scalar_lea.sflag [#allocation4], 1
    %438 = vsyncpa %s437, 1

</llo_original>
